<compile_context>
chip_gen: v5e
topology: v5e:2x2
jax: 0.10.0
libtpu: 0.0.40
codegen_flags: <defaults>
</compile_context>

<pallas_src>
import functools

import jax
import jax.numpy as jnp
from jax.experimental import pallas as pl
from jax.experimental.pallas import tpu as pltpu

LANE_WIDTH = 512       # last dim; multiple of 128 -> lane-dense loads/stores
MAX_TILE_ROWS = 1024   # 1024 x 512 x 4B = 2 MiB per input per pipeline buffer


def _round_up(x, m):
    return (x + m - 1) // m * m


def _bce_blur_kernel(pred_ref, true_ref, out_ref, *,
                     inv_alpha, total_n, tile_rows, lane_width, needs_mask):
    x = pred_ref[...].astype(jnp.float32)   # logits
    y = true_ref[...].astype(jnp.float32)   # targets in [0, 1]

    # exp(-|x|): computed once, reused for BCE and sigmoid.
    e = jnp.exp(-jnp.abs(x))

    # BCEWithLogitsLoss(reduction='none'), numerically stable form:
    #   max(x, 0) - x*y + log(1 + exp(-|x|))
    bce = jnp.maximum(x, 0.0) - x * y + jnp.log1p(e)

    # sigmoid(x) from e:  x >= 0 -> 1/(1+e)   ;   x < 0 -> e/(1+e) = 1 - 1/(1+e)
    s = 1.0 / (1.0 + e)
    p = jnp.where(x >= 0.0, s, 1.0 - s)

    dx = p - y
    alpha_factor = 1.0 - jnp.exp((dx - 1.0) * inv_alpha)
    loss = bce * alpha_factor

    if needs_mask:
        # Zero padded elements. VPU-only work, no extra HBM traffic.
        # TODO(synk): flat index is int32; switch to a 2-level compare for
        #             tensors with >2**31 elements.
        i = pl.program_id(0)
        row = jax.lax.broadcasted_iota(jnp.int32, (tile_rows, lane_width), 0)
        col = jax.lax.broadcasted_iota(jnp.int32, (tile_rows, lane_width), 1)
        flat = (i * tile_rows + row) * lane_width + col
        loss = jnp.where(flat < total_n, loss, 0.0)

    # Lane-parallel partial sum: collapse sublane-groups with VPU adds only
    # (the (T, L) -> (T//8, 8, L) reshape is layout preserving on TPU).
    partial = jnp.sum(loss.reshape(tile_rows // 8, 8, lane_width), axis=0)
    out_ref[...] = partial


def bce_blur_with_logits_loss(pred, true, alpha=0.05):
    assert pred.shape == true.shape
    total_n = pred.size
    # TODO(synk): optionally feed bf16 inputs (halves HBM traffic) if accuracy allows.

    rows = pl.cdiv(total_n, LANE_WIDTH)
    rows = _round_up(rows, 8)                       # sublane alignment
    tile_rows = min(rows, MAX_TILE_ROWS)            # big tiles, but VMEM-safe on v7x
    rows_padded = _round_up(rows, tile_rows)
    num_blocks = rows_padded // tile_rows
    padded_n = rows_padded * LANE_WIDTH
    needs_mask = padded_n != total_n

    def to_slab(a):
        flat = a.reshape(-1)
        if needs_mask:
            flat = jnp.pad(flat, (0, padded_n - total_n))
        return flat.reshape(rows_padded, LANE_WIDTH)

    pred2 = to_slab(pred)
    true2 = to_slab(true)

    kernel = functools.partial(
        _bce_blur_kernel,
        inv_alpha=float(1.0 / (alpha + 1e-4)),
        total_n=int(total_n),
        tile_rows=tile_rows,
        lane_width=LANE_WIDTH,
        needs_mask=needs_mask,
    )

    partials = pl.pallas_call(
        kernel,
        out_shape=jax.ShapeDtypeStruct((num_blocks * 8, LANE_WIDTH), jnp.float32),
        grid_spec=pltpu.PrefetchScalarGridSpec(
            num_scalar_prefetch=0,
            grid=(num_blocks,),
            in_specs=[
                pl.BlockSpec((tile_rows, LANE_WIDTH), lambda i: (i, 0)),
                pl.BlockSpec((tile_rows, LANE_WIDTH), lambda i: (i, 0)),
            ],
            out_specs=pl.BlockSpec((8, LANE_WIDTH), lambda i: (i, 0)),
        ),
        compiler_params=pltpu.CompilerParams(
            dimension_semantics=("parallel",),
        ),
    )(pred2, true2)

    # Tiny final cross-block / cross-lane reduce + mean in XLA.
    return jnp.sum(partials) / jnp.float32(total_n)


def bce_blur_ref(pred, true, alpha=0.05):
    """Pure-JAX reference mirroring the PyTorch BCEBlurWithLogitsLoss module."""
    x = pred.astype(jnp.float32)
    y = true.astype(jnp.float32)
    bce = jnp.maximum(x, 0.0) - x * y + jnp.log1p(jnp.exp(-jnp.abs(x)))
    p = jax.nn.sigmoid(x)
    dx = p - y
    alpha_factor = 1.0 - jnp.exp((dx - 1.0) / (alpha + 1e-4))
    return jnp.mean(bce * alpha_factor)


if __name__ == "__main__":
    key = jax.random.PRNGKey(0)
    k_pred, k_true = jax.random.split(key)

    # NCHW-shaped logits / binary targets (as BCEWithLogitsLoss expects).
    x_shape = (2, 4, 16, 16)
    pred = jax.random.normal(k_pred, x_shape, dtype=jnp.float32)
    true = jax.random.bernoulli(k_true, p=0.3, shape=x_shape).astype(jnp.float32)

    out = bce_blur_with_logits_loss(pred, true, alpha=0.05)
    out = jax.block_until_ready(out)

    ref = bce_blur_ref(pred, true, alpha=0.05)
    assert jnp.allclose(out, ref, rtol=1e-5, atol=1e-6), (out, ref)
    print("KERNEL_OK")
</pallas_src>

<mosaic_0001>
module attributes {stable_mosaic.version = 11 : i64} {
  func.func @_bce_blur_kernel(%arg0: i32, %arg1: memref<8x512xf32, #tpu.memory_space<vmem>>, %arg2: memref<8x512xf32, #tpu.memory_space<vmem>>, %arg3: memref<8x512xf32, #tpu.memory_space<vmem>>) attributes {dimension_semantics = [#tpu.dimension_semantics<parallel>], iteration_bounds = array<i64: 1>, scalar_prefetch = 0 : i64, scratch_operands = 0 : i64, tpu.core_type = #tpu.core_type<tc>, window_params = [{transform_indices = @transform_0, window_bounds = array<i64: 8, 512>}, {transform_indices = @transform_1, window_bounds = array<i64: 8, 512>}, {transform_indices = @transform_2, window_bounds = array<i64: 8, 512>}]} {
    %c0 = arith.constant 0 : index
    %c0_0 = arith.constant 0 : index
    %0 = vector.load %arg1[%c0, %c0_0] : memref<8x512xf32, #tpu.memory_space<vmem>>, vector<8x512xf32>
    %c0_1 = arith.constant 0 : index
    %c0_2 = arith.constant 0 : index
    %1 = vector.load %arg2[%c0_1, %c0_2] : memref<8x512xf32, #tpu.memory_space<vmem>>, vector<8x512xf32>
    %2 = math.absf %0 : vector<8x512xf32>
    %cst = arith.constant 0.000000e+00 : f32
    %3 = vector.broadcast %cst : f32 to vector<8x512xf32>
    %4 = arith.subf %3, %2 : vector<8x512xf32>
    %5 = math.exp %4 : vector<8x512xf32>
    %cst_3 = arith.constant 0.000000e+00 : f32
    %6 = vector.broadcast %cst_3 : f32 to vector<8x512xf32>
    %7 = arith.maximumf %0, %6 : vector<8x512xf32>
    %8 = arith.mulf %0, %1 : vector<8x512xf32>
    %9 = arith.subf %7, %8 : vector<8x512xf32>
    %10 = math.log1p %5 : vector<8x512xf32>
    %11 = arith.addf %9, %10 : vector<8x512xf32>
    %cst_4 = arith.constant 1.000000e+00 : f32
    %12 = vector.broadcast %cst_4 : f32 to vector<8x512xf32>
    %13 = arith.addf %12, %5 : vector<8x512xf32>
    %cst_5 = arith.constant 1.000000e+00 : f32
    %14 = vector.broadcast %cst_5 : f32 to vector<8x512xf32>
    %15 = arith.divf %14, %13 : vector<8x512xf32>
    %cst_6 = arith.constant 0.000000e+00 : f32
    %16 = vector.broadcast %cst_6 : f32 to vector<8x512xf32>
    %17 = arith.cmpf oge, %0, %16 : vector<8x512xf32>
    %cst_7 = arith.constant 1.000000e+00 : f32
    %18 = vector.broadcast %cst_7 : f32 to vector<8x512xf32>
    %19 = arith.subf %18, %15 : vector<8x512xf32>
    %20 = arith.select %17, %15, %19 : vector<8x512xi1>, vector<8x512xf32>
    %21 = arith.subf %20, %1 : vector<8x512xf32>
    %cst_8 = arith.constant 1.000000e+00 : f32
    %22 = vector.broadcast %cst_8 : f32 to vector<8x512xf32>
    %23 = arith.subf %21, %22 : vector<8x512xf32>
    %cst_9 = arith.constant 19.9600792 : f32
    %24 = vector.broadcast %cst_9 : f32 to vector<8x512xf32>
    %25 = arith.mulf %23, %24 : vector<8x512xf32>
    %26 = math.exp %25 : vector<8x512xf32>
    %cst_10 = arith.constant 1.000000e+00 : f32
    %27 = vector.broadcast %cst_10 : f32 to vector<8x512xf32>
    %28 = arith.subf %27, %26 : vector<8x512xf32>
    %29 = arith.mulf %11, %28 : vector<8x512xf32>
    %30 = tpu.iota {dimensions = array<i32: 0>} : vector<8x512xi32>
    %31 = tpu.iota {dimensions = array<i32: 1>} : vector<8x512xi32>
    %c8_i32 = arith.constant 8 : i32
    %32 = arith.muli %arg0, %c8_i32 : i32
    %33 = vector.broadcast %32 : i32 to vector<8x512xi32>
    %34 = arith.addi %33, %30 : vector<8x512xi32>
    %c512_i32 = arith.constant 512 : i32
    %35 = vector.broadcast %c512_i32 : i32 to vector<8x512xi32>
    %36 = arith.muli %34, %35 : vector<8x512xi32>
    %37 = arith.addi %36, %31 : vector<8x512xi32>
    %c2048_i32 = arith.constant 2048 : i32
    %38 = vector.broadcast %c2048_i32 : i32 to vector<8x512xi32>
    %39 = arith.cmpi slt, %37, %38 : vector<8x512xi32>
    %cst_11 = arith.constant 0.000000e+00 : f32
    %40 = vector.broadcast %cst_11 : f32 to vector<8x512xf32>
    %41 = arith.select %39, %29, %40 : vector<8x512xi1>, vector<8x512xf32>
    %42 = vector.shape_cast %41 : vector<8x512xf32> to vector<1x8x512xf32>
    %cst_12 = arith.constant dense<0.000000e+00> : vector<8x512xf32>
    %43 = vector.multi_reduction <add>, %42, %cst_12 [0] : vector<1x8x512xf32> to vector<8x512xf32>
    %c0_13 = arith.constant 0 : index
    %c0_14 = arith.constant 0 : index
    %44 = vector.load %arg3[%c0_13, %c0_14] : memref<8x512xf32, #tpu.memory_space<vmem>>, vector<8x512xf32>
    tpu.vector_store %arg3[%c0_13, %c0_14], %43 {strides = array<i32>} : memref<8x512xf32, #tpu.memory_space<vmem>>, vector<8x512xf32>,
    return
  }
  func.func @transform_0(%arg0: i32) -> (i32, i32) {
    %c0_i32 = arith.constant 0 : i32
    %c0_i32_0 = arith.constant 0 : i32
    return %arg0, %c0_i32 : i32, i32
  }
  func.func @transform_1(%arg0: i32) -> (i32, i32) {
    %c0_i32 = arith.constant 0 : i32
    %c0_i32_0 = arith.constant 0 : i32
    return %arg0, %c0_i32 : i32, i32
  }
  func.func @transform_2(%arg0: i32) -> (i32, i32) {
    %c0_i32 = arith.constant 0 : i32
    %c0_i32_0 = arith.constant 0 : i32
    return %arg0, %c0_i32 : i32, i32
  }
}

</mosaic_0001>

<llo_original>
// kernel: tpu_custom_call.1
$region0: #{tpu_custom_call.1}
  #allocation0 [shape = 'u32[]', space=smem, size = 0x4, offset = 0x4, fixed_abs, tag = 'smem constant byte address 0x4 - core index']
  #allocation1 [shape = 'u32[72,128]{1,0:T(1,128)}', space=vmem, size = 0x9000, scoped, tag = 'internal scratch']
  %s0 = inlined_call_operand.hbm [shape: f32[8,512], index: 0, kind: input, shape index: {}]
  %s1 = inlined_call_operand.hbm [shape: f32[8,512], index: 1, kind: input, shape index: {}]
  %s2 = inlined_call_operand.hbm [shape: f32[8,512], index: 2, kind: output, shape index: {}]
  %s3 = sld [smem:[#allocation0]]
  $region26: #{tpu_custom_call.1} parent=0
    _
  %s5 = ssub.s32 1, %s3
  %s6 = scalar_select 0, %s5, %s3
  $region1: #{tpu_custom_call.1} parent=0
    #allocation2 [shape = 'u8[16384]{0}', space=vmem, size = 0x4000, scoped, tag = 'input window, operand 0, single buffered']
    #allocation3 [shape = 's32[1]{0}', space=sflag, size = 0x4, scoped, tag = 'scoped memory for tpu_custom_call.1']
    #allocation4 [shape = 's32[1]{0}', space=sflag, size = 0x4, scoped, tag = 'scoped memory for tpu_custom_call.1']
    #allocation5 [shape = 'u8[16384]{0}', space=vmem, size = 0x4000, scoped, tag = 'input window, operand 1, single buffered']
    #allocation6 [shape = 's32[1]{0}', space=sflag, size = 0x4, scoped, tag = 'scoped memory for tpu_custom_call.1']
    #allocation7 [shape = 'u8[16384]{0}', space=vmem, size = 0x4000, scoped, tag = 'output window, operand 0, single buffered']
    %7 = vsyncpa [#allocation3], 0
    %8 = vsyncpa [#allocation6], 0
    %9 = vsyncpa [#allocation4], 0
    // Predicated region
    $region2: #{tpu_custom_call.1} parent=1 // pred_check
      _
    $region3: #{tpu_custom_call.1} parent=1 // pred_check_branch
      %11 = sbr.rel (0) target = $region5
    $region4: #{tpu_custom_call.1} parent=1 // pred_region
      %13 = vsyncadd [#allocation3], 0
      %s15 = sshll.u32 %s0, 4
      %s16 = int_to_ptr.hbm [resolvable:$true] %s15
      %s17 = sshll.u32 [#allocation2], 4
      %s18 = int_to_ptr.vmem [resolvable:$true] %s17
      %20 = dma.hbm_to_vmem [thread:$0]  %s16, 512, %s18, [#allocation3]
    $region5: #{tpu_custom_call.1} parent=1 // pred_fallthru
      _
    // Predicated region
    $region6: #{tpu_custom_call.1} parent=1 // pred_check
      _
    $region7: #{tpu_custom_call.1} parent=1 // pred_check_branch
      %22 = sbr.rel (0) target = $region9
    $region8: #{tpu_custom_call.1} parent=1 // pred_region
      %24 = vsyncadd [#allocation6], 0
      %s26 = sshll.u32 %s1, 4
      %s27 = int_to_ptr.hbm [resolvable:$true] %s26
      %s28 = sshll.u32 [#allocation5], 4
      %s29 = int_to_ptr.vmem [resolvable:$true] %s28
      %31 = dma.hbm_to_vmem [thread:$0]  %s27, 512, %s29, [#allocation6]
    $region9: #{tpu_custom_call.1} parent=1 // pred_fallthru
      _
    // Predicated region
    $region10: #{tpu_custom_call.1} parent=1 // pred_check
      _
    $region11: #{tpu_custom_call.1} parent=1 // pred_check_branch
      %33 = sbr.rel (0) target = $region13
    $region12: #{tpu_custom_call.1} parent=1 // pred_region
      %35 = dma.done [#allocation3], 512
    $region13: #{tpu_custom_call.1} parent=1 // pred_fallthru
      _
    // Predicated region
    $region14: #{tpu_custom_call.1} parent=1 // pred_check
      _
    $region15: #{tpu_custom_call.1} parent=1 // pred_check_branch
      %37 = sbr.rel (0) target = $region17
    $region16: #{tpu_custom_call.1} parent=1 // pred_region
      %39 = dma.done [#allocation6], 512
    $region17: #{tpu_custom_call.1} parent=1 // pred_fallthru
      _
    %v40 = vld [vmem:[#allocation2] sm:$0xff]
    %v41 = vld [vmem:[#allocation2 + $0x8] sm:$0xff]
    %v42 = vld [vmem:[#allocation2 + $0x10] sm:$0xff]
    %v43 = vld [vmem:[#allocation2 + $0x18] sm:$0xff]
    %v44 = vld [vmem:[#allocation5] sm:$0xff]
    %v45 = vld [vmem:[#allocation5 + $0x8] sm:$0xff]
    %v46 = vld [vmem:[#allocation5 + $0x10] sm:$0xff]
    %v47 = vld [vmem:[#allocation5 + $0x18] sm:$0xff]
    %v48 = vand.u32 2147483647, %v40
    %v49 = vand.u32 2147483647, %v41
    %v50 = vand.u32 2147483647, %v42
    %v51 = vand.u32 2147483647, %v43
    %v52 = vsub.f32 0.0, %v48
    %v53 = vsub.f32 0.0, %v49
    %v54 = vsub.f32 0.0, %v50
    %v55 = vsub.f32 0.0, %v51
    %v56 = vmul.f32 %v52, 1.442695
    %v57 = vpow.pop %v56
    %v58 = vmul.f32 %v53, 1.442695
    %v59 = vpow.pop %v58
    %v60 = vmul.f32 %v54, 1.442695
    %v61 = vpow.pop %v60
    %v62 = vmul.f32 %v55, 1.442695
    %v63 = vpow.pop %v62
    %v64 = vmax.f32 %v40, 0.0
    %v65 = vmax.f32 %v41, 0.0
    %v66 = vmax.f32 %v42, 0.0
    %v67 = vmax.f32 %v43, 0.0
    %v68 = vmul.f32 %v40, %v44
    %v69 = vmul.f32 %v41, %v45
    %v70 = vmul.f32 %v42, %v46
    %v71 = vmul.f32 %v43, %v47
    %v72 = vsub.f32 %v64, %v68
    %v73 = vsub.f32 %v65, %v69
    %v74 = vsub.f32 %v66, %v70
    %v75 = vsub.f32 %v67, %v71
    %v76 = vadd.f32 %v57, 1.0
    %v77 = vlog2.pop %v76
    %v78 = vmul.f32 %v77, 0.6931472
    %v79 = vmul.f32 -0.5, %v57
    %v80 = vadd.f32 %v79, 1.0
    %v81 = vmul.f32 %v80, %v57
    %v82 = vand.u32 2147483647, %v57
    %vm83 = vcmp.lt.f32.partialorder %v82, 0.0004427343
    %v84 = vsel %vm83, %v81, %v78
    %v85 = vadd.f32 %v59, 1.0
    %v86 = vlog2.pop %v85
    %v87 = vmul.f32 %v86, 0.6931472
    %v88 = vmul.f32 -0.5, %v59
    %v89 = vadd.f32 %v88, 1.0
    %v90 = vmul.f32 %v89, %v59
    %v91 = vand.u32 2147483647, %v59
    %vm92 = vcmp.lt.f32.partialorder %v91, 0.0004427343
    %v93 = vsel %vm92, %v90, %v87
    %v94 = vadd.f32 %v61, 1.0
    %v95 = vlog2.pop %v94
    %v96 = vmul.f32 %v95, 0.6931472
    %v97 = vmul.f32 -0.5, %v61
    %v98 = vadd.f32 %v97, 1.0
    %v99 = vmul.f32 %v98, %v61
    %v100 = vand.u32 2147483647, %v61
    %vm101 = vcmp.lt.f32.partialorder %v100, 0.0004427343
    %v102 = vsel %vm101, %v99, %v96
    %v103 = vadd.f32 %v63, 1.0
    %v104 = vlog2.pop %v103
    %v105 = vmul.f32 %v104, 0.6931472
    %v106 = vmul.f32 -0.5, %v63
    %v107 = vadd.f32 %v106, 1.0
    %v108 = vmul.f32 %v107, %v63
    %v109 = vand.u32 2147483647, %v63
    %vm110 = vcmp.lt.f32.partialorder %v109, 0.0004427343
    %v111 = vsel %vm110, %v108, %v105
    %v112 = vadd.f32 %v72, %v84
    %v113 = vadd.f32 %v73, %v93
    %v114 = vadd.f32 %v74, %v102
    %v115 = vadd.f32 %v75, %v111
    %v116 = vadd.f32 %v57, 1.0
    %v117 = vadd.f32 %v59, 1.0
    %v118 = vadd.f32 %v61, 1.0
    %v119 = vadd.f32 %v63, 1.0
    %v120 = vrcp.pop %v116
    %v121 = vmul.f32 %v116, %v120
    %v122 = vsub.f32 1.0, %v121
    %v123 = vmul.f32 %v120, %v122
    %v124 = vadd.f32 %v120, %v123
    %vm125 = vweird.f32 %v116
    %vm126 = vweird.f32 %v120
    %vm127 = vmor %vm125, %vm126
    %v128 = vsel %vm127, %v120, %v124
    %v129 = vand.u32 2147483647, %v116
    %vm130 = vcmp.eq.f32.partialorder %v129, 8.507059e+37
    %v131 = vand.u32 %v116, 2147483648
    %v132 = vor.u32 1.1754944e-38, %v131
    %v133 = vsel %vm130, %v132, %v128
    %v134 = vmul.f32 1.0, %v133
    %v135 = vrcp.pop %v117
    %v136 = vmul.f32 %v117, %v135
    %v137 = vsub.f32 1.0, %v136
    %v138 = vmul.f32 %v135, %v137
    %v139 = vadd.f32 %v135, %v138
    %vm140 = vweird.f32 %v117
    %vm141 = vweird.f32 %v135
    %vm142 = vmor %vm140, %vm141
    %v143 = vsel %vm142, %v135, %v139
    %v144 = vand.u32 2147483647, %v117
    %vm145 = vcmp.eq.f32.partialorder %v144, 8.507059e+37
    %v146 = vand.u32 %v117, 2147483648
    %v147 = vor.u32 1.1754944e-38, %v146
    %v148 = vsel %vm145, %v147, %v143
    %v149 = vmul.f32 1.0, %v148
    %v150 = vrcp.pop %v118
    %v151 = vmul.f32 %v118, %v150
    %v152 = vsub.f32 1.0, %v151
    %v153 = vmul.f32 %v150, %v152
    %v154 = vadd.f32 %v150, %v153
    %vm155 = vweird.f32 %v118
    %vm156 = vweird.f32 %v150
    %vm157 = vmor %vm155, %vm156
    %v158 = vsel %vm157, %v150, %v154
    %v159 = vand.u32 2147483647, %v118
    %vm160 = vcmp.eq.f32.partialorder %v159, 8.507059e+37
    %v161 = vand.u32 %v118, 2147483648
    %v162 = vor.u32 1.1754944e-38, %v161
    %v163 = vsel %vm160, %v162, %v158
    %v164 = vmul.f32 1.0, %v163
    %v165 = vrcp.pop %v119
    %v166 = vmul.f32 %v119, %v165
    %v167 = vsub.f32 1.0, %v166
    %v168 = vmul.f32 %v165, %v167
    %v169 = vadd.f32 %v165, %v168
    %vm170 = vweird.f32 %v119
    %vm171 = vweird.f32 %v165
    %vm172 = vmor %vm170, %vm171
    %v173 = vsel %vm172, %v165, %v169
    %v174 = vand.u32 2147483647, %v119
    %vm175 = vcmp.eq.f32.partialorder %v174, 8.507059e+37
    %v176 = vand.u32 %v119, 2147483648
    %v177 = vor.u32 1.1754944e-38, %v176
    %v178 = vsel %vm175, %v177, %v173
    %v179 = vmul.f32 1.0, %v178
    %vm180 = vcmp.ge.f32.partialorder %v40, 0.0
    %vm181 = vcmp.ge.f32.partialorder %v41, 0.0
    %vm182 = vcmp.ge.f32.partialorder %v42, 0.0
    %vm183 = vcmp.ge.f32.partialorder %v43, 0.0
    %v184 = vsub.f32 1.0, %v134
    %v185 = vsub.f32 1.0, %v149
    %v186 = vsub.f32 1.0, %v164
    %v187 = vsub.f32 1.0, %v179
    %v188 = vsel %vm180, %v134, %v184
    %v189 = vsel %vm181, %v149, %v185
    %v190 = vsel %vm182, %v164, %v186
    %v191 = vsel %vm183, %v179, %v187
    %v192 = vsub.f32 %v188, %v44
    %v193 = vsub.f32 %v189, %v45
    %v194 = vsub.f32 %v190, %v46
    %v195 = vsub.f32 %v191, %v47
    %v196 = vsub.f32 %v192, 1.0
    %v197 = vsub.f32 %v193, 1.0
    %v198 = vsub.f32 %v194, 1.0
    %v199 = vsub.f32 %v195, 1.0
    %v200 = vmul.f32 %v196, 19.96008
    %v201 = vmul.f32 %v197, 19.96008
    %v202 = vmul.f32 %v198, 19.96008
    %v203 = vmul.f32 %v199, 19.96008
    %v204 = vmul.f32 %v200, 1.442695
    %v205 = vpow.pop %v204
    %v206 = vmul.f32 %v201, 1.442695
    %v207 = vpow.pop %v206
    %v208 = vmul.f32 %v202, 1.442695
    %v209 = vpow.pop %v208
    %v210 = vmul.f32 %v203, 1.442695
    %v211 = vpow.pop %v210
    %v212 = vsub.f32 1.0, %v205
    %v213 = vsub.f32 1.0, %v207
    %v214 = vsub.f32 1.0, %v209
    %v215 = vsub.f32 1.0, %v211
    %v216 = vmul.f32 %v112, %v212
    %v217 = vmul.f32 %v113, %v213
    %v218 = vmul.f32 %v114, %v214
    %v219 = vmul.f32 %v115, %v215
    %v220 = vlaneseq
    %v221 = vshrl.u32 %v220, 7
    %v222 = vlaneseq
    %v223 = vand.u32 %v222, 127
    %v224 = vadd.s32 %v223, 128
    %v225 = vadd.s32 %v223, 256
    %v226 = vadd.s32 %v223, 384
    %s227 = smul.u32 0, 8
    %v228 = vstv %s227
    %v229 = vadd.s32 %v228, %v221
    %v230 = vmul.u32 %v229, 512
    %v231 = vadd.s32 %v230, %v223
    %v232 = vadd.s32 %v230, %v224
    %v233 = vadd.s32 %v230, %v225
    %v234 = vadd.s32 %v230, %v226
    %vm235 = vcmp.lt.s32.totalorder %v231, 2048
    %vm236 = vcmp.lt.s32.totalorder %v232, 2048
    %vm237 = vcmp.lt.s32.totalorder %v233, 2048
    %vm238 = vcmp.lt.s32.totalorder %v234, 2048
    %v239 = vsel %vm235, %v216, 0.0
    %v240 = vsel %vm236, %v217, 0.0
    %v241 = vsel %vm237, %v218, 0.0
    %v242 = vsel %vm238, %v219, 0.0
    %v243 = vadd.f32 %v239, 0.0
    %v244 = vadd.f32 %v240, 0.0
    %v245 = vadd.f32 %v241, 0.0
    %v246 = vadd.f32 %v242, 0.0
    %247 = vst [vmem:[#allocation7] sm:$0xff] %v243
    %248 = vst [vmem:[#allocation7 + $0x8] sm:$0xff] %v244
    %249 = vst [vmem:[#allocation7 + $0x10] sm:$0xff] %v245
    %250 = vst [vmem:[#allocation7 + $0x18] sm:$0xff] %v246
    // Predicated region
    $region18: #{tpu_custom_call.1} parent=1 // pred_check
      _
    $region19: #{tpu_custom_call.1} parent=1 // pred_check_branch
      %252 = sbr.rel (0) target = $region21
    $region20: #{tpu_custom_call.1} parent=1 // pred_region
      %254 = vsyncadd [#allocation4], 0
      %s256 = sshll.u32 [#allocation7], 4
      %s257 = int_to_ptr.vmem [resolvable:$true] %s256
      %s258 = sshll.u32 %s2, 4
      %s259 = int_to_ptr.hbm [resolvable:$true] %s258
      %261 = dma.vmem_to_hbm [thread:$0]  %s257, 512, %s259, [#allocation4]
    $region21: #{tpu_custom_call.1} parent=1 // pred_fallthru
      _
    // Predicated region
    $region22: #{tpu_custom_call.1} parent=1 // pred_check
      _
    $region23: #{tpu_custom_call.1} parent=1 // pred_check_branch
      %263 = sbr.rel (0) target = $region25
    $region24: #{tpu_custom_call.1} parent=1 // pred_region
      %265 = dma.done [#allocation4], 512
    $region25: #{tpu_custom_call.1} parent=1 // pred_fallthru
      _
    %266 = vsyncpa [#allocation3], 1
    %267 = vsyncpa [#allocation6], 1
    %268 = vsyncpa [#allocation4], 1

</llo_original>
